<compile_context>
chip_gen: v5e
topology: v5e:2x2
jax: 0.10.0
libtpu: 0.0.40
codegen_flags: <defaults>
</compile_context>

<pallas_src>
import functools

import jax
import jax.numpy as jnp
import numpy as np
from jax import lax
from jax.experimental import pallas as pl
from jax.experimental.pallas import tpu as pltpu

NGRAMS_MAX = 4      # self.ngrams_max
SIGMA = 6.0         # self.sigma
NUM_IMAGES = 6      # number of (hypothesis, references) pairs (>1 required)
NUM_REFS = 3        # references per image
VOCAB = 128         # synthetic vocabulary size per n-gram order (lane dim)
LANES = 128         # lane-dense output width


def _cider_kernel(df_ref, hyp_ref, ref_ref, hlen_ref, rlen_ref, out_ref,
                  *, num_images, num_refs, ngrams, sigma, i_pad):
    lanes = out_ref.shape[-1]

    # ---- TF-IDF log-weights: computed exactly once over the [N, V] table -----
    log_ref_len = float(np.log(num_images))
    w = log_ref_len - jnp.log(jnp.maximum(df_ref[...], 1.0))          # [N, V]

    sim_acc = jnp.zeros((num_refs, i_pad, 1), jnp.float32)

    # Static unroll over n-gram orders.  Order-major layout (from the wrapper)
    # makes each order's hyp/ref rows contiguous, tile-aligned slabs, so the
    # TF-IDF weight application is a plain single-row sublane broadcast.
    for n in range(ngrams):
        wn = w[n:n + 1, :]                                            # [1, V]
        hw = hyp_ref[n] * wn                                          # [I_pad, V]
        gw = ref_ref[n] * wn                                          # [R, I_pad, V]

        nh2 = jnp.sum(hw * hw, axis=-1, keepdims=True)                # [I_pad, 1]
        ng2 = jnp.sum(gw * gw, axis=-1, keepdims=True)                # [R, I_pad, 1]
        val = jnp.sum(jnp.minimum(hw[None], gw) * gw,
                      axis=-1, keepdims=True)                         # [R, I_pad, 1]

        # sim = val / (norm_h * norm_r), guarded for zero norms, via EUP rsqrt.
        denom2 = nh2[None] * ng2                                      # [R, I_pad, 1]
        inv = lax.rsqrt(jnp.where(denom2 > 0.0, denom2, 1.0))
        sim_acc = sim_acc + jnp.where(denom2 > 0.0, val * inv, val)

    # ---- gaussian length penalty: one small vector exp over (ref, image) -----
    delta = hlen_ref[...][None] - rlen_ref[...]                       # [R, I_pad, 1]
    pen = jnp.exp(-(delta * delta) * (1.0 / (2.0 * sigma * sigma)))
    contrib = sim_acc * pen                                           # [R, I_pad, 1]

    # ---- segmented reduce: per-image scores + corpus mean, one tile store ----
    scale = 10.0 / (ngrams * num_refs)
    per_image = jnp.sum(contrib, axis=0) * scale                      # [I_pad, 1]; padded rows are 0
    mean = jnp.sum(per_image, axis=0, keepdims=True) * (1.0 / num_images)   # [1, 1]

    scores_tile = jnp.broadcast_to(per_image, (i_pad, lanes))         # lane-dense
    mean_tile = jnp.broadcast_to(mean, (i_pad, lanes))
    row = lax.broadcasted_iota(jnp.int32, (i_pad, lanes), 0)
    # rows [0, num_images) = per-image scores, row num_images = corpus mean.
    out_ref[...] = jnp.where(row == num_images, mean_tile, scores_tile)


@functools.partial(jax.jit, static_argnames=("sigma",))
def cider_d_pallas(hyp_counts, ref_counts, doc_freq, hyp_len, ref_len,
                   *, sigma=SIGMA):
    """Returns (corpus_score, per_image_scores[I])."""
    num_images, n, v = hyp_counts.shape
    num_refs = ref_counts.shape[1]
    # Pad images to a full sublane tile, leaving one extra row for the mean.
    i_pad = ((num_images + 1 + 7) // 8) * 8
    pad_i = i_pad - num_images
    f32 = jnp.float32

    # Wrapper-side layout plumbing only (no x num_refs replication of the
    # hypothesis): order-major, image-padded, tile-aligned slabs.
    hyp_om = jnp.pad(jnp.transpose(hyp_counts.astype(f32), (1, 0, 2)),
                     ((0, 0), (0, pad_i), (0, 0)))                    # [N, I_pad, V]
    ref_om = jnp.pad(jnp.transpose(ref_counts.astype(f32), (2, 1, 0, 3)),
                     ((0, 0), (0, 0), (0, pad_i), (0, 0)))            # [N, R, I_pad, V]
    hlen_c = jnp.pad(hyp_len.astype(f32)[:, None],
                     ((0, pad_i), (0, 0)))                            # [I_pad, 1]
    rlen_c = jnp.pad(jnp.transpose(ref_len.astype(f32), (1, 0))[:, :, None],
                     ((0, 0), (0, pad_i), (0, 0)))                    # [R, I_pad, 1]
    df = doc_freq.astype(f32)                                         # [N, V]

    kernel = functools.partial(
        _cider_kernel, num_images=num_images, num_refs=num_refs,
        ngrams=n, sigma=sigma, i_pad=i_pad)

    cost = pl.CostEstimate(
        flops=int(n * i_pad * v * (3 + 7 * num_refs) + 8 * num_refs * i_pad),
        transcendentals=int(n * v + num_refs * i_pad * (n + 1)),
        bytes_accessed=int(4 * (n * v + n * i_pad * v + n * num_refs * i_pad * v
                                + i_pad + num_refs * i_pad + i_pad * LANES)),
    )

    vmem_spec = pl.BlockSpec(memory_space=pltpu.MemorySpace.VMEM)
    out = pl.pallas_call(
        kernel,
        out_shape=jax.ShapeDtypeStruct((i_pad, LANES), jnp.float32),
        in_specs=[vmem_spec] * 5,
        out_specs=vmem_spec,
        cost_estimate=cost,
    )(df, hyp_om, ref_om, hlen_c, rlen_c)

    scores = out[:num_images, 0]
    score = out[num_images, 0]
    return score, scores


def cider_d_reference(hyp_counts, ref_counts, doc_freq, hyp_len, ref_len,
                      *, sigma=SIGMA):
    """Pure numpy reference mirroring CiderDScorer.compute_cider()."""
    hyp_counts = np.asarray(hyp_counts, np.float64)
    ref_counts = np.asarray(ref_counts, np.float64)
    doc_freq = np.asarray(doc_freq, np.float64)
    hyp_len = np.asarray(hyp_len, np.float64)
    ref_len = np.asarray(ref_len, np.float64)
    num_images, n, _ = hyp_counts.shape
    num_refs = ref_counts.shape[1]
    w = np.log(float(num_images)) - np.log(np.maximum(doc_freq, 1.0))
    scores = np.zeros(num_images)
    for i in range(num_images):
        h = hyp_counts[i] * w
        nh = np.sqrt((h * h).sum(-1))
        acc = np.zeros(n)
        for r in range(num_refs):
            rv = ref_counts[i, r] * w
            nr = np.sqrt((rv * rv).sum(-1))
            val = (np.minimum(h, rv) * rv).sum(-1)
            denom = nh * nr
            val = np.where(denom != 0.0, val / np.where(denom != 0.0, denom, 1.0), val)
            delta = hyp_len[i] - ref_len[i, r]
            val = val * np.exp(-(delta * delta) / (2.0 * sigma * sigma))
            acc += val
        scores[i] = acc.mean() / num_refs * 10.0
    return scores.mean(), scores


if __name__ == "__main__":
    # TODO(synk): string tokenization / n-gram dict extraction has no Pallas
    # equivalent; synthetic dense n-gram count tensors stand in for it.
    key = jax.random.PRNGKey(0)
    k1, k2, k3, k4 = jax.random.split(key, 4)

    # Sparse-ish non-negative n-gram counts.
    hyp_counts = (
        jax.random.randint(k1, (NUM_IMAGES, NGRAMS_MAX, VOCAB), 0, 4)
        * jax.random.bernoulli(k2, 0.15, (NUM_IMAGES, NGRAMS_MAX, VOCAB))
    ).astype(jnp.float32)
    ref_counts = (
        jax.random.randint(k3, (NUM_IMAGES, NUM_REFS, NGRAMS_MAX, VOCAB), 0, 4)
        * jax.random.bernoulli(k4, 0.15, (NUM_IMAGES, NUM_REFS, NGRAMS_MAX, VOCAB))
    ).astype(jnp.float32)

    # Document frequency: #images in which an n-gram appears in any reference.
    doc_freq = jnp.sum(jnp.any(ref_counts > 0, axis=1), axis=0).astype(jnp.float32)

    # Sentence lengths = total unigram count.
    hyp_len = jnp.sum(hyp_counts[:, 0, :], axis=-1).astype(jnp.int32)        # [I]
    ref_len = jnp.sum(ref_counts[:, :, 0, :], axis=-1).astype(jnp.int32)     # [I, R]

    score, scores = cider_d_pallas(hyp_counts, ref_counts, doc_freq,
                                   hyp_len, ref_len, sigma=SIGMA)
    score = jax.block_until_ready(score)
    scores = jax.block_until_ready(scores)

    ref_score, ref_scores = cider_d_reference(hyp_counts, ref_counts, doc_freq,
                                              hyp_len, ref_len, sigma=SIGMA)
    np.testing.assert_allclose(np.asarray(scores), ref_scores, rtol=1e-5, atol=1e-5)
    np.testing.assert_allclose(float(score), ref_score, rtol=1e-5, atol=1e-5)
    print("KERNEL_OK")
</pallas_src>

<mosaic_0001>
module attributes {stable_mosaic.version = 11 : i64} {
  func.func @_cider_kernel(%arg0: memref<4x128xf32, #tpu.memory_space<vmem>>, %arg1: memref<4x8x128xf32, #tpu.memory_space<vmem>>, %arg2: memref<4x3x8x128xf32, #tpu.memory_space<vmem>>, %arg3: memref<8x1xf32, #tpu.memory_space<vmem>>, %arg4: memref<3x8x1xf32, #tpu.memory_space<vmem>>, %arg5: memref<8x128xf32, #tpu.memory_space<vmem>>) attributes {dimension_semantics = [], scalar_prefetch = 0 : i64, scratch_operands = 0 : i64, tpu.core_type = #tpu.core_type<tc>} {
    %c0 = arith.constant 0 : index
    %c0_0 = arith.constant 0 : index
    %0 = vector.load %arg0[%c0, %c0_0] : memref<4x128xf32, #tpu.memory_space<vmem>>, vector<4x128xf32>
    %cst = arith.constant 1.000000e+00 : f32
    %1 = vector.broadcast %cst : f32 to vector<4x128xf32>
    %2 = arith.maximumf %0, %1 : vector<4x128xf32>
    %3 = math.log %2 : vector<4x128xf32>
    %cst_1 = arith.constant 1.79175949 : f32
    %4 = vector.broadcast %cst_1 : f32 to vector<4x128xf32>
    %5 = arith.subf %4, %3 : vector<4x128xf32>
    %cst_2 = arith.constant 0.000000e+00 : f32
    %6 = vector.broadcast %cst_2 : f32 to vector<3x8x1xf32>
    %7 = vector.extract_strided_slice %5 {offsets = [0, 0], sizes = [1, 128], strides = [1, 1]} : vector<4x128xf32> to vector<1x128xf32>
    %c0_3 = arith.constant 0 : index
    %c0_4 = arith.constant 0 : index
    %c0_5 = arith.constant 0 : index
    %8 = vector.load %arg1[%c0_3, %c0_4, %c0_5] : memref<4x8x128xf32, #tpu.memory_space<vmem>>, vector<1x8x128xf32>
    %9 = vector.shape_cast %8 : vector<1x8x128xf32> to vector<8x128xf32>
    %10 = vector.broadcast %7 : vector<1x128xf32> to vector<8x128xf32>
    %11 = arith.mulf %9, %10 : vector<8x128xf32>
    %c0_6 = arith.constant 0 : index
    %c0_7 = arith.constant 0 : index
    %c0_8 = arith.constant 0 : index
    %c0_9 = arith.constant 0 : index
    %12 = vector.load %arg2[%c0_6, %c0_7, %c0_8, %c0_9] : memref<4x3x8x128xf32, #tpu.memory_space<vmem>>, vector<1x3x8x128xf32>
    %13 = vector.shape_cast %12 : vector<1x3x8x128xf32> to vector<3x8x128xf32>
    %14 = vector.shape_cast %7 : vector<1x128xf32> to vector<1x1x128xf32>
    %15 = vector.broadcast %14 : vector<1x1x128xf32> to vector<3x8x128xf32>
    %16 = arith.mulf %13, %15 : vector<3x8x128xf32>
    %17 = arith.mulf %11, %11 : vector<8x128xf32>
    %cst_10 = arith.constant dense<0.000000e+00> : vector<8xf32>
    %18 = vector.multi_reduction <add>, %17, %cst_10 [1] : vector<8x128xf32> to vector<8xf32>
    %19 = vector.shape_cast %18 : vector<8xf32> to vector<8x1xf32>
    %20 = arith.mulf %16, %16 : vector<3x8x128xf32>
    %cst_11 = arith.constant dense<0.000000e+00> : vector<3x8xf32>
    %21 = vector.multi_reduction <add>, %20, %cst_11 [2] : vector<3x8x128xf32> to vector<3x8xf32>
    %22 = vector.shape_cast %21 : vector<3x8xf32> to vector<3x8x1xf32>
    %23 = vector.shape_cast %11 : vector<8x128xf32> to vector<1x8x128xf32>
    %24 = vector.broadcast %23 : vector<1x8x128xf32> to vector<3x8x128xf32>
    %25 = arith.minimumf %24, %16 : vector<3x8x128xf32>
    %26 = arith.mulf %25, %16 : vector<3x8x128xf32>
    %cst_12 = arith.constant dense<0.000000e+00> : vector<3x8xf32>
    %27 = vector.multi_reduction <add>, %26, %cst_12 [2] : vector<3x8x128xf32> to vector<3x8xf32>
    %28 = vector.shape_cast %27 : vector<3x8xf32> to vector<3x8x1xf32>
    %29 = vector.shape_cast %19 : vector<8x1xf32> to vector<1x8x1xf32>
    %30 = vector.broadcast %29 : vector<1x8x1xf32> to vector<3x8x1xf32>
    %31 = arith.mulf %30, %22 : vector<3x8x1xf32>
    %cst_13 = arith.constant 0.000000e+00 : f32
    %32 = vector.broadcast %cst_13 : f32 to vector<3x8x1xf32>
    %33 = arith.cmpf ogt, %31, %32 : vector<3x8x1xf32>
    %cst_14 = arith.constant 1.000000e+00 : f32
    %34 = vector.broadcast %cst_14 : f32 to vector<3x8x1xf32>
    %35 = arith.select %33, %31, %34 : vector<3x8x1xi1>, vector<3x8x1xf32>
    %36 = math.rsqrt %35 : vector<3x8x1xf32>
    %cst_15 = arith.constant 0.000000e+00 : f32
    %37 = vector.broadcast %cst_15 : f32 to vector<3x8x1xf32>
    %38 = arith.cmpf ogt, %31, %37 : vector<3x8x1xf32>
    %39 = arith.mulf %28, %36 : vector<3x8x1xf32>
    %40 = arith.select %38, %39, %28 : vector<3x8x1xi1>, vector<3x8x1xf32>
    %41 = arith.addf %6, %40 : vector<3x8x1xf32>
    %42 = vector.extract_strided_slice %5 {offsets = [1, 0], sizes = [1, 128], strides = [1, 1]} : vector<4x128xf32> to vector<1x128xf32>
    %c1 = arith.constant 1 : index
    %c0_16 = arith.constant 0 : index
    %c0_17 = arith.constant 0 : index
    %43 = vector.load %arg1[%c1, %c0_16, %c0_17] : memref<4x8x128xf32, #tpu.memory_space<vmem>>, vector<1x8x128xf32>
    %44 = vector.shape_cast %43 : vector<1x8x128xf32> to vector<8x128xf32>
    %45 = vector.broadcast %42 : vector<1x128xf32> to vector<8x128xf32>
    %46 = arith.mulf %44, %45 : vector<8x128xf32>
    %c1_18 = arith.constant 1 : index
    %c0_19 = arith.constant 0 : index
    %c0_20 = arith.constant 0 : index
    %c0_21 = arith.constant 0 : index
    %47 = vector.load %arg2[%c1_18, %c0_19, %c0_20, %c0_21] : memref<4x3x8x128xf32, #tpu.memory_space<vmem>>, vector<1x3x8x128xf32>
    %48 = vector.shape_cast %47 : vector<1x3x8x128xf32> to vector<3x8x128xf32>
    %49 = vector.shape_cast %42 : vector<1x128xf32> to vector<1x1x128xf32>
    %50 = vector.broadcast %49 : vector<1x1x128xf32> to vector<3x8x128xf32>
    %51 = arith.mulf %48, %50 : vector<3x8x128xf32>
    %52 = arith.mulf %46, %46 : vector<8x128xf32>
    %cst_22 = arith.constant dense<0.000000e+00> : vector<8xf32>
    %53 = vector.multi_reduction <add>, %52, %cst_22 [1] : vector<8x128xf32> to vector<8xf32>
    %54 = vector.shape_cast %53 : vector<8xf32> to vector<8x1xf32>
    %55 = arith.mulf %51, %51 : vector<3x8x128xf32>
    %cst_23 = arith.constant dense<0.000000e+00> : vector<3x8xf32>
    %56 = vector.multi_reduction <add>, %55, %cst_23 [2] : vector<3x8x128xf32> to vector<3x8xf32>
    %57 = vector.shape_cast %56 : vector<3x8xf32> to vector<3x8x1xf32>
    %58 = vector.shape_cast %46 : vector<8x128xf32> to vector<1x8x128xf32>
    %59 = vector.broadcast %58 : vector<1x8x128xf32> to vector<3x8x128xf32>
    %60 = arith.minimumf %59, %51 : vector<3x8x128xf32>
    %61 = arith.mulf %60, %51 : vector<3x8x128xf32>
    %cst_24 = arith.constant dense<0.000000e+00> : vector<3x8xf32>
    %62 = vector.multi_reduction <add>, %61, %cst_24 [2] : vector<3x8x128xf32> to vector<3x8xf32>
    %63 = vector.shape_cast %62 : vector<3x8xf32> to vector<3x8x1xf32>
    %64 = vector.shape_cast %54 : vector<8x1xf32> to vector<1x8x1xf32>
    %65 = vector.broadcast %64 : vector<1x8x1xf32> to vector<3x8x1xf32>
    %66 = arith.mulf %65, %57 : vector<3x8x1xf32>
    %cst_25 = arith.constant 0.000000e+00 : f32
    %67 = vector.broadcast %cst_25 : f32 to vector<3x8x1xf32>
    %68 = arith.cmpf ogt, %66, %67 : vector<3x8x1xf32>
    %cst_26 = arith.constant 1.000000e+00 : f32
    %69 = vector.broadcast %cst_26 : f32 to vector<3x8x1xf32>
    %70 = arith.select %68, %66, %69 : vector<3x8x1xi1>, vector<3x8x1xf32>
    %71 = math.rsqrt %70 : vector<3x8x1xf32>
    %cst_27 = arith.constant 0.000000e+00 : f32
    %72 = vector.broadcast %cst_27 : f32 to vector<3x8x1xf32>
    %73 = arith.cmpf ogt, %66, %72 : vector<3x8x1xf32>
    %74 = arith.mulf %63, %71 : vector<3x8x1xf32>
    %75 = arith.select %73, %74, %63 : vector<3x8x1xi1>, vector<3x8x1xf32>
    %76 = arith.addf %41, %75 : vector<3x8x1xf32>
    %77 = vector.extract_strided_slice %5 {offsets = [2, 0], sizes = [1, 128], strides = [1, 1]} : vector<4x128xf32> to vector<1x128xf32>
    %c2 = arith.constant 2 : index
    %c0_28 = arith.constant 0 : index
    %c0_29 = arith.constant 0 : index
    %78 = vector.load %arg1[%c2, %c0_28, %c0_29] : memref<4x8x128xf32, #tpu.memory_space<vmem>>, vector<1x8x128xf32>
    %79 = vector.shape_cast %78 : vector<1x8x128xf32> to vector<8x128xf32>
    %80 = vector.broadcast %77 : vector<1x128xf32> to vector<8x128xf32>
    %81 = arith.mulf %79, %80 : vector<8x128xf32>
    %c2_30 = arith.constant 2 : index
    %c0_31 = arith.constant 0 : index
    %c0_32 = arith.constant 0 : index
    %c0_33 = arith.constant 0 : index
    %82 = vector.load %arg2[%c2_30, %c0_31, %c0_32, %c0_33] : memref<4x3x8x128xf32, #tpu.memory_space<vmem>>, vector<1x3x8x128xf32>
    %83 = vector.shape_cast %82 : vector<1x3x8x128xf32> to vector<3x8x128xf32>
    %84 = vector.shape_cast %77 : vector<1x128xf32> to vector<1x1x128xf32>
    %85 = vector.broadcast %84 : vector<1x1x128xf32> to vector<3x8x128xf32>
    %86 = arith.mulf %83, %85 : vector<3x8x128xf32>
    %87 = arith.mulf %81, %81 : vector<8x128xf32>
    %cst_34 = arith.constant dense<0.000000e+00> : vector<8xf32>
    %88 = vector.multi_reduction <add>, %87, %cst_34 [1] : vector<8x128xf32> to vector<8xf32>
    %89 = vector.shape_cast %88 : vector<8xf32> to vector<8x1xf32>
    %90 = arith.mulf %86, %86 : vector<3x8x128xf32>
    %cst_35 = arith.constant dense<0.000000e+00> : vector<3x8xf32>
    %91 = vector.multi_reduction <add>, %90, %cst_35 [2] : vector<3x8x128xf32> to vector<3x8xf32>
    %92 = vector.shape_cast %91 : vector<3x8xf32> to vector<3x8x1xf32>
    %93 = vector.shape_cast %81 : vector<8x128xf32> to vector<1x8x128xf32>
    %94 = vector.broadcast %93 : vector<1x8x128xf32> to vector<3x8x128xf32>
    %95 = arith.minimumf %94, %86 : vector<3x8x128xf32>
    %96 = arith.mulf %95, %86 : vector<3x8x128xf32>
    %cst_36 = arith.constant dense<0.000000e+00> : vector<3x8xf32>
    %97 = vector.multi_reduction <add>, %96, %cst_36 [2] : vector<3x8x128xf32> to vector<3x8xf32>
    %98 = vector.shape_cast %97 : vector<3x8xf32> to vector<3x8x1xf32>
    %99 = vector.shape_cast %89 : vector<8x1xf32> to vector<1x8x1xf32>
    %100 = vector.broadcast %99 : vector<1x8x1xf32> to vector<3x8x1xf32>
    %101 = arith.mulf %100, %92 : vector<3x8x1xf32>
    %cst_37 = arith.constant 0.000000e+00 : f32
    %102 = vector.broadcast %cst_37 : f32 to vector<3x8x1xf32>
    %103 = arith.cmpf ogt, %101, %102 : vector<3x8x1xf32>
    %cst_38 = arith.constant 1.000000e+00 : f32
    %104 = vector.broadcast %cst_38 : f32 to vector<3x8x1xf32>
    %105 = arith.select %103, %101, %104 : vector<3x8x1xi1>, vector<3x8x1xf32>
    %106 = math.rsqrt %105 : vector<3x8x1xf32>
    %cst_39 = arith.constant 0.000000e+00 : f32
    %107 = vector.broadcast %cst_39 : f32 to vector<3x8x1xf32>
    %108 = arith.cmpf ogt, %101, %107 : vector<3x8x1xf32>
    %109 = arith.mulf %98, %106 : vector<3x8x1xf32>
    %110 = arith.select %108, %109, %98 : vector<3x8x1xi1>, vector<3x8x1xf32>
    %111 = arith.addf %76, %110 : vector<3x8x1xf32>
    %112 = vector.extract_strided_slice %5 {offsets = [3, 0], sizes = [1, 128], strides = [1, 1]} : vector<4x128xf32> to vector<1x128xf32>
    %c3 = arith.constant 3 : index
    %c0_40 = arith.constant 0 : index
    %c0_41 = arith.constant 0 : index
    %113 = vector.load %arg1[%c3, %c0_40, %c0_41] : memref<4x8x128xf32, #tpu.memory_space<vmem>>, vector<1x8x128xf32>
    %114 = vector.shape_cast %113 : vector<1x8x128xf32> to vector<8x128xf32>
    %115 = vector.broadcast %112 : vector<1x128xf32> to vector<8x128xf32>
    %116 = arith.mulf %114, %115 : vector<8x128xf32>
    %c3_42 = arith.constant 3 : index
    %c0_43 = arith.constant 0 : index
    %c0_44 = arith.constant 0 : index
    %c0_45 = arith.constant 0 : index
    %117 = vector.load %arg2[%c3_42, %c0_43, %c0_44, %c0_45] : memref<4x3x8x128xf32, #tpu.memory_space<vmem>>, vector<1x3x8x128xf32>
    %118 = vector.shape_cast %117 : vector<1x3x8x128xf32> to vector<3x8x128xf32>
    %119 = vector.shape_cast %112 : vector<1x128xf32> to vector<1x1x128xf32>
    %120 = vector.broadcast %119 : vector<1x1x128xf32> to vector<3x8x128xf32>
    %121 = arith.mulf %118, %120 : vector<3x8x128xf32>
    %122 = arith.mulf %116, %116 : vector<8x128xf32>
    %cst_46 = arith.constant dense<0.000000e+00> : vector<8xf32>
    %123 = vector.multi_reduction <add>, %122, %cst_46 [1] : vector<8x128xf32> to vector<8xf32>
    %124 = vector.shape_cast %123 : vector<8xf32> to vector<8x1xf32>
    %125 = arith.mulf %121, %121 : vector<3x8x128xf32>
    %cst_47 = arith.constant dense<0.000000e+00> : vector<3x8xf32>
    %126 = vector.multi_reduction <add>, %125, %cst_47 [2] : vector<3x8x128xf32> to vector<3x8xf32>
    %127 = vector.shape_cast %126 : vector<3x8xf32> to vector<3x8x1xf32>
    %128 = vector.shape_cast %116 : vector<8x128xf32> to vector<1x8x128xf32>
    %129 = vector.broadcast %128 : vector<1x8x128xf32> to vector<3x8x128xf32>
    %130 = arith.minimumf %129, %121 : vector<3x8x128xf32>
    %131 = arith.mulf %130, %121 : vector<3x8x128xf32>
    %cst_48 = arith.constant dense<0.000000e+00> : vector<3x8xf32>
    %132 = vector.multi_reduction <add>, %131, %cst_48 [2] : vector<3x8x128xf32> to vector<3x8xf32>
    %133 = vector.shape_cast %132 : vector<3x8xf32> to vector<3x8x1xf32>
    %134 = vector.shape_cast %124 : vector<8x1xf32> to vector<1x8x1xf32>
    %135 = vector.broadcast %134 : vector<1x8x1xf32> to vector<3x8x1xf32>
    %136 = arith.mulf %135, %127 : vector<3x8x1xf32>
    %cst_49 = arith.constant 0.000000e+00 : f32
    %137 = vector.broadcast %cst_49 : f32 to vector<3x8x1xf32>
    %138 = arith.cmpf ogt, %136, %137 : vector<3x8x1xf32>
    %cst_50 = arith.constant 1.000000e+00 : f32
    %139 = vector.broadcast %cst_50 : f32 to vector<3x8x1xf32>
    %140 = arith.select %138, %136, %139 : vector<3x8x1xi1>, vector<3x8x1xf32>
    %141 = math.rsqrt %140 : vector<3x8x1xf32>
    %cst_51 = arith.constant 0.000000e+00 : f32
    %142 = vector.broadcast %cst_51 : f32 to vector<3x8x1xf32>
    %143 = arith.cmpf ogt, %136, %142 : vector<3x8x1xf32>
    %144 = arith.mulf %133, %141 : vector<3x8x1xf32>
    %145 = arith.select %143, %144, %133 : vector<3x8x1xi1>, vector<3x8x1xf32>
    %146 = arith.addf %111, %145 : vector<3x8x1xf32>
    %c0_52 = arith.constant 0 : index
    %c0_53 = arith.constant 0 : index
    %147 = vector.load %arg3[%c0_52, %c0_53] : memref<8x1xf32, #tpu.memory_space<vmem>>, vector<8x1xf32>
    %148 = vector.shape_cast %147 : vector<8x1xf32> to vector<1x8x1xf32>
    %c0_54 = arith.constant 0 : index
    %c0_55 = arith.constant 0 : index
    %c0_56 = arith.constant 0 : index
    %149 = vector.load %arg4[%c0_54, %c0_55, %c0_56] : memref<3x8x1xf32, #tpu.memory_space<vmem>>, vector<3x8x1xf32>
    %150 = vector.broadcast %148 : vector<1x8x1xf32> to vector<3x8x1xf32>
    %151 = arith.subf %150, %149 : vector<3x8x1xf32>
    %152 = arith.mulf %151, %151 : vector<3x8x1xf32>
    %cst_57 = arith.constant 0.000000e+00 : f32
    %153 = vector.broadcast %cst_57 : f32 to vector<3x8x1xf32>
    %154 = arith.subf %153, %152 : vector<3x8x1xf32>
    %cst_58 = arith.constant 0.013888889 : f32
    %155 = vector.broadcast %cst_58 : f32 to vector<3x8x1xf32>
    %156 = arith.mulf %154, %155 : vector<3x8x1xf32>
    %157 = math.exp %156 : vector<3x8x1xf32>
    %158 = arith.mulf %146, %157 : vector<3x8x1xf32>
    %cst_59 = arith.constant dense<0.000000e+00> : vector<8x1xf32>
    %159 = vector.multi_reduction <add>, %158, %cst_59 [0] : vector<3x8x1xf32> to vector<8x1xf32>
    %cst_60 = arith.constant 0.833333313 : f32
    %160 = vector.broadcast %cst_60 : f32 to vector<8x1xf32>
    %161 = arith.mulf %159, %160 : vector<8x1xf32>
    %cst_61 = arith.constant dense<0.000000e+00> : vector<1xf32>
    %162 = vector.multi_reduction <add>, %161, %cst_61 [0] : vector<8x1xf32> to vector<1xf32>
    %163 = vector.shape_cast %162 : vector<1xf32> to vector<1x1xf32>
    %cst_62 = arith.constant 0.166666672 : f32
    %164 = vector.broadcast %cst_62 : f32 to vector<1x1xf32>
    %165 = arith.mulf %163, %164 : vector<1x1xf32>
    %166 = vector.shape_cast %161 : vector<8x1xf32> to vector<8x1xf32>
    %167 = vector.broadcast %166 : vector<8x1xf32> to vector<8x128xf32>
    %168 = vector.shape_cast %165 : vector<1x1xf32> to vector<1x1xf32>
    %169 = vector.broadcast %168 : vector<1x1xf32> to vector<8x128xf32>
    %170 = tpu.iota {dimensions = array<i32: 0>} : vector<8x128xi32>
    %c6_i32 = arith.constant 6 : i32
    %171 = vector.broadcast %c6_i32 : i32 to vector<8x128xi32>
    %172 = arith.cmpi eq, %170, %171 : vector<8x128xi32>
    %173 = arith.select %172, %169, %167 : vector<8x128xi1>, vector<8x128xf32>
    %c0_63 = arith.constant 0 : index
    %c0_64 = arith.constant 0 : index
    %174 = vector.load %arg5[%c0_63, %c0_64] : memref<8x128xf32, #tpu.memory_space<vmem>>, vector<8x128xf32>
    tpu.vector_store %arg5[%c0_63, %c0_64], %173 {strides = array<i32>} : memref<8x128xf32, #tpu.memory_space<vmem>>, vector<8x128xf32>,
    return
  }
}

</mosaic_0001>

<llo_original>
// kernel: cider_d_pallas.1
$region0: #{cider_d_pallas.1}
  #allocation0 [shape = 'u32[]', space=smem, size = 0x4, offset = 0x4, fixed_abs, tag = 'smem constant byte address 0x4 - core index']
  #allocation1 [shape = 'u32[72,128]{1,0:T(1,128)}', space=vmem, size = 0x9000, scoped, tag = 'internal scratch']
  %s0 = inlined_call_operand.vmem [shape: f32[4,128], index: 0, kind: input, shape index: {}]
  %s1 = inlined_call_operand.vmem [shape: f32[4,8,128], index: 1, kind: input, shape index: {}]
  %s2 = inlined_call_operand.vmem [shape: f32[4,3,8,128], index: 2, kind: input, shape index: {}]
  %s3 = inlined_call_operand.vmem [shape: f32[8,1], index: 3, kind: input, shape index: {}]
  %s4 = inlined_call_operand.vmem [shape: f32[3,8,1], index: 4, kind: input, shape index: {}]
  %s5 = inlined_call_operand.vmem [shape: f32[8,128], index: 5, kind: output, shape index: {}]
  %s6 = sld [smem:[#allocation0]]
  $region30: #{cider_d_pallas.1} parent=0
    _
  %s8 = ssub.s32 1, %s6
  %s9 = scalar_select 0, %s8, %s6
  // Predicated region
  $region2: #{cider_d_pallas.1} parent=0 // pred_check
    _
  $region3: #{cider_d_pallas.1} parent=0 // pred_check_branch
    %11 = sbr.rel (0) target = $region5
  $region4: #{cider_d_pallas.1} parent=0 // pred_region
    _
  $region5: #{cider_d_pallas.1} parent=0 // pred_fallthru
    _
  // Predicated region
  $region6: #{cider_d_pallas.1} parent=0 // pred_check
    _
  $region7: #{cider_d_pallas.1} parent=0 // pred_check_branch
    %13 = sbr.rel (0) target = $region9
  $region8: #{cider_d_pallas.1} parent=0 // pred_region
    _
  $region9: #{cider_d_pallas.1} parent=0 // pred_fallthru
    _
  // Predicated region
  $region10: #{cider_d_pallas.1} parent=0 // pred_check
    _
  $region11: #{cider_d_pallas.1} parent=0 // pred_check_branch
    %15 = sbr.rel (0) target = $region13
  $region12: #{cider_d_pallas.1} parent=0 // pred_region
    _
  $region13: #{cider_d_pallas.1} parent=0 // pred_fallthru
    _
  // Predicated region
  $region14: #{cider_d_pallas.1} parent=0 // pred_check
    _
  $region15: #{cider_d_pallas.1} parent=0 // pred_check_branch
    %17 = sbr.rel (0) target = $region17
  $region16: #{cider_d_pallas.1} parent=0 // pred_region
    _
  $region17: #{cider_d_pallas.1} parent=0 // pred_fallthru
    _
  // Predicated region
  $region18: #{cider_d_pallas.1} parent=0 // pred_check
    _
  $region19: #{cider_d_pallas.1} parent=0 // pred_check_branch
    %19 = sbr.rel (0) target = $region21
  $region20: #{cider_d_pallas.1} parent=0 // pred_region
    _
  $region21: #{cider_d_pallas.1} parent=0 // pred_fallthru
    _
  %v20 = vld [vmem:[%s0] sm:$0xf]
  %v21 = vmax.f32 %v20, 1.0
  %v22 = vlog2.pop %v21
  %v23 = vmul.f32 %v22, 0.6931472
  %v24 = vsub.f32 1.7917595, %v23
  %v25 = vld [vmem:[%s1] sm:$0xff]
  %v26 = vperm.slane %v24, 0
  %v27 = vmul.f32 %v25, %v26
  %v28 = vld [vmem:[%s2] sm:$0xff]
  %v29 = vld [vmem:[%s2 + $0x8] sm:$0xff]
  %v30 = vld [vmem:[%s2 + $0x10] sm:$0xff]
  %v31 = vmul.f32 %v28, %v26
  %v32 = vmul.f32 %v29, %v26
  %v33 = vmul.f32 %v30, %v26
  %v34 = vmul.f32 %v27, %v27
  %35 = vadd.xlane.f32.xlu0 %v34
  %v36 = vpop.xlane.xlu0 %35
  %v37 = vmul.f32 %v31, %v31
  %v38 = vmul.f32 %v32, %v32
  %v39 = vmul.f32 %v33, %v33
  %40 = vadd.xlane.f32.xlu0 %v37
  %v41 = vpop.xlane.xlu0 %40
  %42 = vadd.xlane.f32.xlu0 %v38
  %v43 = vpop.xlane.xlu0 %42
  %44 = vadd.xlane.f32.xlu0 %v39
  %v45 = vpop.xlane.xlu0 %44
  %v46 = vmin.f32 %v27, %v31
  %v47 = vmin.f32 %v27, %v32
  %v48 = vmin.f32 %v27, %v33
  %v49 = vmul.f32 %v46, %v31
  %v50 = vmul.f32 %v47, %v32
  %v51 = vmul.f32 %v48, %v33
  %52 = vadd.xlane.f32.xlu0 %v49
  %v53 = vpop.xlane.xlu0 %52
  %54 = vadd.xlane.f32.xlu0 %v50
  %v55 = vpop.xlane.xlu0 %54
  %56 = vadd.xlane.f32.xlu0 %v51
  %v57 = vpop.xlane.xlu0 %56
  %v58 = vmul.f32 %v36, %v41
  %v59 = vmul.f32 %v36, %v43
  %v60 = vmul.f32 %v36, %v45
  %vm61 = vcmp.gt.f32.partialorder %v58, 0.0
  %vm62 = vcmp.gt.f32.partialorder %v59, 0.0
  %vm63 = vcmp.gt.f32.partialorder %v60, 0.0
  %v64 = vsel %vm61, %v58, 1.0
  %v65 = vsel %vm62, %v59, 1.0
  %v66 = vsel %vm63, %v60, 1.0
  %v67 = vrsqrt.pop %v64
  %v68 = vmul.f32 %v67, %v64
  %v69 = vmul.f32 %v68, %v67
  %v70 = vmul.f32 0.5, %v69
  %v71 = vsub.f32 1.5, %v70
  %v72 = vmul.f32 %v67, %v71
  %vm73 = vweird.f32 %v64
  %vm74 = vweird.f32 %v67
  %vm75 = vmor %vm73, %vm74
  %v76 = vsel %vm75, %v67, %v72
  %v77 = vrsqrt.pop %v65
  %v78 = vmul.f32 %v77, %v65
  %v79 = vmul.f32 %v78, %v77
  %v80 = vmul.f32 0.5, %v79
  %v81 = vsub.f32 1.5, %v80
  %v82 = vmul.f32 %v77, %v81
  %vm83 = vweird.f32 %v65
  %vm84 = vweird.f32 %v77
  %vm85 = vmor %vm83, %vm84
  %v86 = vsel %vm85, %v77, %v82
  %v87 = vrsqrt.pop %v66
  %v88 = vmul.f32 %v87, %v66
  %v89 = vmul.f32 %v88, %v87
  %v90 = vmul.f32 0.5, %v89
  %v91 = vsub.f32 1.5, %v90
  %v92 = vmul.f32 %v87, %v91
  %vm93 = vweird.f32 %v66
  %vm94 = vweird.f32 %v87
  %vm95 = vmor %vm93, %vm94
  %v96 = vsel %vm95, %v87, %v92
  %v97 = vmul.f32 %v53, %v76
  %v98 = vmul.f32 %v55, %v86
  %v99 = vmul.f32 %v57, %v96
  %v100 = vsel %vm61, %v97, %v53
  %v101 = vsel %vm62, %v98, %v55
  %v102 = vsel %vm63, %v99, %v57
  %v103 = vadd.f32 %v100, 0.0
  %v104 = vadd.f32 %v101, 0.0
  %v105 = vadd.f32 %v102, 0.0
  %s106 = scalar_lea.vmem %s1, 8
  %v107 = vld [vmem:[%s106] sm:$0xff]
  %v108 = vperm.slane %v24, 1
  %v109 = vmul.f32 %v107, %v108
  %s110 = scalar_lea.vmem %s2, 24
  %v111 = vld [vmem:[%s110] sm:$0xff]
  %v112 = vld [vmem:[%s110 + $0x8] sm:$0xff]
  %v113 = vld [vmem:[%s110 + $0x10] sm:$0xff]
  %v114 = vmul.f32 %v111, %v108
  %v115 = vmul.f32 %v112, %v108
  %v116 = vmul.f32 %v113, %v108
  %v117 = vmul.f32 %v109, %v109
  %118 = vadd.xlane.f32.xlu0 %v117
  %v119 = vpop.xlane.xlu0 %118
  %v120 = vmul.f32 %v114, %v114
  %v121 = vmul.f32 %v115, %v115
  %v122 = vmul.f32 %v116, %v116
  %123 = vadd.xlane.f32.xlu0 %v120
  %v124 = vpop.xlane.xlu0 %123
  %125 = vadd.xlane.f32.xlu0 %v121
  %v126 = vpop.xlane.xlu0 %125
  %127 = vadd.xlane.f32.xlu0 %v122
  %v128 = vpop.xlane.xlu0 %127
  %v129 = vmin.f32 %v109, %v114
  %v130 = vmin.f32 %v109, %v115
  %v131 = vmin.f32 %v109, %v116
  %v132 = vmul.f32 %v129, %v114
  %v133 = vmul.f32 %v130, %v115
  %v134 = vmul.f32 %v131, %v116
  %135 = vadd.xlane.f32.xlu0 %v132
  %v136 = vpop.xlane.xlu0 %135
  %137 = vadd.xlane.f32.xlu0 %v133
  %v138 = vpop.xlane.xlu0 %137
  %139 = vadd.xlane.f32.xlu0 %v134
  %v140 = vpop.xlane.xlu0 %139
  %v141 = vmul.f32 %v119, %v124
  %v142 = vmul.f32 %v119, %v126
  %v143 = vmul.f32 %v119, %v128
  %vm144 = vcmp.gt.f32.partialorder %v141, 0.0
  %vm145 = vcmp.gt.f32.partialorder %v142, 0.0
  %vm146 = vcmp.gt.f32.partialorder %v143, 0.0
  %v147 = vsel %vm144, %v141, 1.0
  %v148 = vsel %vm145, %v142, 1.0
  %v149 = vsel %vm146, %v143, 1.0
  %v150 = vrsqrt.pop %v147
  %v151 = vmul.f32 %v150, %v147
  %v152 = vmul.f32 %v151, %v150
  %v153 = vmul.f32 0.5, %v152
  %v154 = vsub.f32 1.5, %v153
  %v155 = vmul.f32 %v150, %v154
  %vm156 = vweird.f32 %v147
  %vm157 = vweird.f32 %v150
  %vm158 = vmor %vm156, %vm157
  %v159 = vsel %vm158, %v150, %v155
  %v160 = vrsqrt.pop %v148
  %v161 = vmul.f32 %v160, %v148
  %v162 = vmul.f32 %v161, %v160
  %v163 = vmul.f32 0.5, %v162
  %v164 = vsub.f32 1.5, %v163
  %v165 = vmul.f32 %v160, %v164
  %vm166 = vweird.f32 %v148
  %vm167 = vweird.f32 %v160
  %vm168 = vmor %vm166, %vm167
  %v169 = vsel %vm168, %v160, %v165
  %v170 = vrsqrt.pop %v149
  %v171 = vmul.f32 %v170, %v149
  %v172 = vmul.f32 %v171, %v170
  %v173 = vmul.f32 0.5, %v172
  %v174 = vsub.f32 1.5, %v173
  %v175 = vmul.f32 %v170, %v174
  %vm176 = vweird.f32 %v149
  %vm177 = vweird.f32 %v170
  %vm178 = vmor %vm176, %vm177
  %v179 = vsel %vm178, %v170, %v175
  %v180 = vmul.f32 %v136, %v159
  %v181 = vmul.f32 %v138, %v169
  %v182 = vmul.f32 %v140, %v179
  %v183 = vsel %vm144, %v180, %v136
  %v184 = vsel %vm145, %v181, %v138
  %v185 = vsel %vm146, %v182, %v140
  %v186 = vadd.f32 %v103, %v183
  %v187 = vadd.f32 %v104, %v184
  %v188 = vadd.f32 %v105, %v185
  %s189 = scalar_lea.vmem %s1, 16
  %v190 = vld [vmem:[%s189] sm:$0xff]
  %v191 = vperm.slane %v24, 2
  %v192 = vmul.f32 %v190, %v191
  %s193 = scalar_lea.vmem %s2, 48
  %v194 = vld [vmem:[%s193] sm:$0xff]
  %v195 = vld [vmem:[%s193 + $0x8] sm:$0xff]
  %v196 = vld [vmem:[%s193 + $0x10] sm:$0xff]
  %v197 = vmul.f32 %v194, %v191
  %v198 = vmul.f32 %v195, %v191
  %v199 = vmul.f32 %v196, %v191
  %v200 = vmul.f32 %v192, %v192
  %201 = vadd.xlane.f32.xlu0 %v200
  %v202 = vpop.xlane.xlu0 %201
  %v203 = vmul.f32 %v197, %v197
  %v204 = vmul.f32 %v198, %v198
  %v205 = vmul.f32 %v199, %v199
  %206 = vadd.xlane.f32.xlu0 %v203
  %v207 = vpop.xlane.xlu0 %206
  %208 = vadd.xlane.f32.xlu0 %v204
  %v209 = vpop.xlane.xlu0 %208
  %210 = vadd.xlane.f32.xlu0 %v205
  %v211 = vpop.xlane.xlu0 %210
  %v212 = vmin.f32 %v192, %v197
  %v213 = vmin.f32 %v192, %v198
  %v214 = vmin.f32 %v192, %v199
  %v215 = vmul.f32 %v212, %v197
  %v216 = vmul.f32 %v213, %v198
  %v217 = vmul.f32 %v214, %v199
  %218 = vadd.xlane.f32.xlu0 %v215
  %v219 = vpop.xlane.xlu0 %218
  %220 = vadd.xlane.f32.xlu0 %v216
  %v221 = vpop.xlane.xlu0 %220
  %222 = vadd.xlane.f32.xlu0 %v217
  %v223 = vpop.xlane.xlu0 %222
  %v224 = vmul.f32 %v202, %v207
  %v225 = vmul.f32 %v202, %v209
  %v226 = vmul.f32 %v202, %v211
  %vm227 = vcmp.gt.f32.partialorder %v224, 0.0
  %vm228 = vcmp.gt.f32.partialorder %v225, 0.0
  %vm229 = vcmp.gt.f32.partialorder %v226, 0.0
  %v230 = vsel %vm227, %v224, 1.0
  %v231 = vsel %vm228, %v225, 1.0
  %v232 = vsel %vm229, %v226, 1.0
  %v233 = vrsqrt.pop %v230
  %v234 = vmul.f32 %v233, %v230
  %v235 = vmul.f32 %v234, %v233
  %v236 = vmul.f32 0.5, %v235
  %v237 = vsub.f32 1.5, %v236
  %v238 = vmul.f32 %v233, %v237
  %vm239 = vweird.f32 %v230
  %vm240 = vweird.f32 %v233
  %vm241 = vmor %vm239, %vm240
  %v242 = vsel %vm241, %v233, %v238
  %v243 = vrsqrt.pop %v231
  %v244 = vmul.f32 %v243, %v231
  %v245 = vmul.f32 %v244, %v243
  %v246 = vmul.f32 0.5, %v245
  %v247 = vsub.f32 1.5, %v246
  %v248 = vmul.f32 %v243, %v247
  %vm249 = vweird.f32 %v231
  %vm250 = vweird.f32 %v243
  %vm251 = vmor %vm249, %vm250
  %v252 = vsel %vm251, %v243, %v248
  %v253 = vrsqrt.pop %v232
  %v254 = vmul.f32 %v253, %v232
  %v255 = vmul.f32 %v254, %v253
  %v256 = vmul.f32 0.5, %v255
  %v257 = vsub.f32 1.5, %v256
  %v258 = vmul.f32 %v253, %v257
  %vm259 = vweird.f32 %v232
  %vm260 = vweird.f32 %v253
  %vm261 = vmor %vm259, %vm260
  %v262 = vsel %vm261, %v253, %v258
  %v263 = vmul.f32 %v219, %v242
  %v264 = vmul.f32 %v221, %v252
  %v265 = vmul.f32 %v223, %v262
  %v266 = vsel %vm227, %v263, %v219
  %v267 = vsel %vm228, %v264, %v221
  %v268 = vsel %vm229, %v265, %v223
  %v269 = vadd.f32 %v186, %v266
  %v270 = vadd.f32 %v187, %v267
  %v271 = vadd.f32 %v188, %v268
  %s272 = scalar_lea.vmem %s1, 24
  %v273 = vld [vmem:[%s272] sm:$0xff]
  %v274 = vperm.slane %v24, 3
  %v275 = vmul.f32 %v273, %v274
  %s276 = scalar_lea.vmem %s2, 72
  %v277 = vld [vmem:[%s276] sm:$0xff]
  %v278 = vld [vmem:[%s276 + $0x8] sm:$0xff]
  %v279 = vld [vmem:[%s276 + $0x10] sm:$0xff]
  %v280 = vmul.f32 %v277, %v274
  %v281 = vmul.f32 %v278, %v274
  %v282 = vmul.f32 %v279, %v274
  %v283 = vmul.f32 %v275, %v275
  %284 = vadd.xlane.f32.xlu0 %v283
  %v285 = vpop.xlane.xlu0 %284
  %v286 = vmul.f32 %v280, %v280
  %v287 = vmul.f32 %v281, %v281
  %v288 = vmul.f32 %v282, %v282
  %289 = vadd.xlane.f32.xlu0 %v286
  %v290 = vpop.xlane.xlu0 %289
  %291 = vadd.xlane.f32.xlu0 %v287
  %v292 = vpop.xlane.xlu0 %291
  %293 = vadd.xlane.f32.xlu0 %v288
  %v294 = vpop.xlane.xlu0 %293
  %v295 = vmin.f32 %v275, %v280
  %v296 = vmin.f32 %v275, %v281
  %v297 = vmin.f32 %v275, %v282
  %v298 = vmul.f32 %v295, %v280
  %v299 = vmul.f32 %v296, %v281
  %v300 = vmul.f32 %v297, %v282
  %301 = vadd.xlane.f32.xlu0 %v298
  %v302 = vpop.xlane.xlu0 %301
  %303 = vadd.xlane.f32.xlu0 %v299
  %v304 = vpop.xlane.xlu0 %303
  %305 = vadd.xlane.f32.xlu0 %v300
  %v306 = vpop.xlane.xlu0 %305
  %v307 = vmul.f32 %v285, %v290
  %v308 = vmul.f32 %v285, %v292
  %v309 = vmul.f32 %v285, %v294
  %vm310 = vcmp.gt.f32.partialorder %v307, 0.0
  %vm311 = vcmp.gt.f32.partialorder %v308, 0.0
  %vm312 = vcmp.gt.f32.partialorder %v309, 0.0
  %v313 = vsel %vm310, %v307, 1.0
  %v314 = vsel %vm311, %v308, 1.0
  %v315 = vsel %vm312, %v309, 1.0
  %v316 = vrsqrt.pop %v313
  %v317 = vmul.f32 %v316, %v313
  %v318 = vmul.f32 %v317, %v316
  %v319 = vmul.f32 0.5, %v318
  %v320 = vsub.f32 1.5, %v319
  %v321 = vmul.f32 %v316, %v320
  %vm322 = vweird.f32 %v313
  %vm323 = vweird.f32 %v316
  %vm324 = vmor %vm322, %vm323
  %v325 = vsel %vm324, %v316, %v321
  %v326 = vrsqrt.pop %v314
  %v327 = vmul.f32 %v326, %v314
  %v328 = vmul.f32 %v327, %v326
  %v329 = vmul.f32 0.5, %v328
  %v330 = vsub.f32 1.5, %v329
  %v331 = vmul.f32 %v326, %v330
  %vm332 = vweird.f32 %v314
  %vm333 = vweird.f32 %v326
  %vm334 = vmor %vm332, %vm333
  %v335 = vsel %vm334, %v326, %v331
  %v336 = vrsqrt.pop %v315
  %v337 = vmul.f32 %v336, %v315
  %v338 = vmul.f32 %v337, %v336
  %v339 = vmul.f32 0.5, %v338
  %v340 = vsub.f32 1.5, %v339
  %v341 = vmul.f32 %v336, %v340
  %vm342 = vweird.f32 %v315
  %vm343 = vweird.f32 %v336
  %vm344 = vmor %vm342, %vm343
  %v345 = vsel %vm344, %v336, %v341
  %v346 = vmul.f32 %v302, %v325
  %v347 = vmul.f32 %v304, %v335
  %v348 = vmul.f32 %v306, %v345
  %v349 = vsel %vm310, %v346, %v302
  %v350 = vsel %vm311, %v347, %v304
  %v351 = vsel %vm312, %v348, %v306
  %v352 = vadd.f32 %v269, %v349
  %v353 = vadd.f32 %v270, %v350
  %v354 = vadd.f32 %v271, %v351
  %v355 = vld [vmem:[%s3] sm:$0xff]
  %v356 = vld [vmem:[%s4] sm:$0xff]
  %v357 = vld [vmem:[%s4 + $0x8] sm:$0xff]
  %v358 = vld [vmem:[%s4 + $0x10] sm:$0xff]
  %v359 = vsub.f32 %v355, %v356
  %v360 = vsub.f32 %v355, %v357
  %v361 = vsub.f32 %v355, %v358
  %v362 = vmul.f32 %v359, %v359
  %v363 = vmul.f32 %v360, %v360
  %v364 = vmul.f32 %v361, %v361
  %v365 = vsub.f32 0.0, %v362
  %v366 = vsub.f32 0.0, %v363
  %v367 = vsub.f32 0.0, %v364
  %v368 = vmul.f32 %v365, 0.013888889
  %v369 = vmul.f32 %v366, 0.013888889
  %v370 = vmul.f32 %v367, 0.013888889
  %v371 = vmul.f32 %v368, 1.442695
  %v372 = vpow.pop %v371
  %v373 = vmul.f32 %v369, 1.442695
  %v374 = vpow.pop %v373
  %v375 = vmul.f32 %v370, 1.442695
  %v376 = vpow.pop %v375
  %v377 = vmul.f32 %v352, %v372
  %v378 = vmul.f32 %v353, %v374
  %v379 = vmul.f32 %v354, %v376
  %vm380 = vcmask 7168
  %v381 = vsel %vm380, %v377, 0.0
  %v382 = vsel %vm380, %v378, 0.0
  %v383 = vadd.f32 %v381, %v382
  %v384 = vsel %vm380, %v379, 0.0
  %v385 = vadd.f32 %v383, %v384
  %v386 = vmul.f32 %v385, 0.8333333
  %v387 = vsel %vm380, %v386, 0.0
  %v388 = vrot.slane %v387, 4
  %v389 = vadd.f32 %v387, %v388
  %v390 = vrot.slane %v389, 2
  %v391 = vadd.f32 %v389, %v390
  %v392 = vrot.slane %v391, 1
  %v393 = vadd.f32 %v391, %v392
  %v394 = vmul.f32 %v393, 0.16666667
  %396 = vset.pattern.permute.xlu0 0
  %397 = vperm.xlu0 %396, %v386
  %v398 = vpop.permute.xlu0 %397
  %401 = vset.pattern.permute.xlu0 0
  %402 = vperm.xlu0 %401, %v394
  %v403 = vpop.permute.xlu0 %402
  %v405 = vlaneseq
  %v406 = vshrl.u32 %v405, 7
  %vm407 = vcmp.eq.s32.totalorder %v406, 6
  %v408 = vsel %vm407, %v403, %v398
  %409 = vst [vmem:[%s5] sm:$0xff] %v408
  // Predicated region
  $region22: #{cider_d_pallas.1} parent=0 // pred_check
    _
  $region23: #{cider_d_pallas.1} parent=0 // pred_check_branch
    %411 = sbr.rel (0) target = $region25
  $region24: #{cider_d_pallas.1} parent=0 // pred_region
    _
  $region25: #{cider_d_pallas.1} parent=0 // pred_fallthru
    _
  // Predicated region
  $region26: #{cider_d_pallas.1} parent=0 // pred_check
    _
  $region27: #{cider_d_pallas.1} parent=0 // pred_check_branch
    %413 = sbr.rel (0) target = $region29
  $region28: #{cider_d_pallas.1} parent=0 // pred_region
    _
  $region29: #{cider_d_pallas.1} parent=0 // pred_fallthru
    _

</llo_original>
